<compile_context>
chip_gen: v7x
topology: tpu7x:2x2x1
jax: 0.10.0
libtpu: 0.0.40
codegen_flags: <defaults>
</compile_context>

<pallas_src>
import functools

import jax
import jax.numpy as jnp
from jax.experimental import pallas as pl
from jax.experimental.pallas import tpu as pltpu

_H1, _H2 = 64, 32                        # hidden widths fixed by the module
_VMEM_LIMIT = 32 * 1024 * 1024           # safe scoped-VMEM limit on v5e/v6e/v7x
_VMEM_TILE_BUDGET = 20 * 1024 * 1024     # tile-sizing budget (headroom under limit)
_TB_CAP = 16 * 1024                      # review-recommended cap (v7x-safe)


def _mlp_kernel(x_ref, w1_ref, b1_ref, w2_ref, b2_ref, w3_ref, b3_ref, o_ref):
    # x_ref: (TB, in) f32; w*: (in, out) f32; b*: (1, out) f32; o_ref: (TB, out) f32.
    def leaky_relu(v):
        # Identical to where(v > 0, v, 0.2*v) for slope in (0, 1); mul + max only.
        return jnp.maximum(v, 0.2 * v)

    x = x_ref[...]
    h1 = leaky_relu(
        jnp.dot(x, w1_ref[...], preferred_element_type=jnp.float32) + b1_ref[...])
    h2 = leaky_relu(
        jnp.dot(h1, w2_ref[...], preferred_element_type=jnp.float32) + b2_ref[...])
    h3 = jnp.dot(h2, w3_ref[...], preferred_element_type=jnp.float32) + b3_ref[...]
    o_ref[...] = h3.astype(o_ref.dtype)


def _pick_batch_tile(B, in_features, out_features):
    """Largest 256-aligned batch tile fitting the VMEM budget (capped at 16K)."""
    # Bytes of VMEM one batch row costs: double-buffered x/out tiles plus the
    # f32 h1/h2 intermediates (x2 as headroom for compiler temporaries).
    per_row = 2 * in_features * 4 + 2 * out_features * 4 + 2 * (_H1 + _H2) * 4
    resident = 4 * (in_features * _H1 + _H1 * _H2 + _H2 * out_features
                    + _H1 + _H2 + out_features)
    tb = (_VMEM_TILE_BUDGET - resident) // per_row
    tb = max(256, min(int(tb), _TB_CAP))
    tb -= tb % 256
    return B if B <= tb else tb


@functools.partial(jax.jit, static_argnames=("tb",))
def extrapolation_network(x, params, tb=None):
    """x: (B, in_features) f32. params in PyTorch layout: w* (out, in), b* (out,)."""
    B, in_features = x.shape
    h1_dim, h2_dim = params["w1"].shape[0], params["w2"].shape[0]
    out_features = params["w3"].shape[0]

    TB = tb if tb is not None else _pick_batch_tile(B, in_features, out_features)
    TB = min(TB, B)
    grid_n = pl.cdiv(B, TB)  # ragged last block handled by Pallas (no pad pass)

    # One-time tiny re-layouts (a few KiB): weights -> (in, out), biases -> (1, out).
    w1t = params["w1"].T.astype(jnp.float32)
    w2t = params["w2"].T.astype(jnp.float32)
    w3t = params["w3"].T.astype(jnp.float32)
    b1r = params["b1"].reshape(1, -1).astype(jnp.float32)
    b2r = params["b2"].reshape(1, -1).astype(jnp.float32)
    b3r = params["b3"].reshape(1, -1).astype(jnp.float32)

    flops = 2 * B * (in_features * h1_dim + h1_dim * h2_dim + h2_dim * out_features)
    bytes_accessed = (B * in_features * 4 + B * out_features * 4
                      + 4 * (w1t.size + w2t.size + w3t.size
                             + b1r.size + b2r.size + b3r.size))
    cost = pl.CostEstimate(flops=flops, transcendentals=0,
                           bytes_accessed=bytes_accessed)

    # Weights/biases: constant index_map -> stay VMEM-resident across the grid;
    # single-buffered (block never changes) to halve their VMEM footprint.
    def resident(arr):
        return pl.BlockSpec(arr.shape, lambda i: (0, 0),
                            pipeline_mode=pl.Buffered(1))

    out = pl.pallas_call(
        _mlp_kernel,
        out_shape=jax.ShapeDtypeStruct((B, out_features), jnp.float32),
        grid=(grid_n,),
        in_specs=[
            pl.BlockSpec((TB, in_features), lambda i: (i, 0)),  # pipelined x tile
            resident(w1t), resident(b1r),
            resident(w2t), resident(b2r),
            resident(w3t), resident(b3r),
        ],
        out_specs=pl.BlockSpec((TB, out_features), lambda i: (i, 0)),
        compiler_params=pltpu.CompilerParams(
            dimension_semantics=("parallel",),   # megacore split of batch grid (v7x)
            vmem_limit_bytes=_VMEM_LIMIT,
        ),
        cost_estimate=cost,
    )(x.astype(jnp.float32), w1t, b1r, w2t, b2r, w3t, b3r)

    return out


def init_params(key, in_shape, out_shape):
    """Deterministic init mimicking nn.Linear (weight (out, in), bias (out,))."""
    ks = jax.random.split(key, 6)

    def linear(kw, kb, fan_in, fan_out):
        bound = 1.0 / (fan_in ** 0.5)
        w = jax.random.uniform(kw, (fan_out, fan_in), jnp.float32, -bound, bound)
        b = jax.random.uniform(kb, (fan_out,), jnp.float32, -bound, bound)
        return w, b

    w1, b1 = linear(ks[0], ks[1], in_shape, _H1)
    w2, b2 = linear(ks[2], ks[3], _H1, _H2)
    w3, b3 = linear(ks[4], ks[5], _H2, out_shape)
    return dict(w1=w1, b1=b1, w2=w2, b2=b2, w3=w3, b3=b3)


def reference(x, p):
    """Pure-JAX f32 reference (HIGHEST matmul precision)."""
    hi = jax.lax.Precision.HIGHEST
    lrelu = lambda v: jnp.maximum(v, 0.2 * v)
    h = lrelu(jnp.dot(x, p["w1"].T, precision=hi) + p["b1"])
    h = lrelu(jnp.dot(h, p["w2"].T, precision=hi) + p["b2"])
    return jnp.dot(h, p["w3"].T, precision=hi) + p["b3"]


if __name__ == "__main__":
    key = jax.random.PRNGKey(0)
    kx, kp, kx2 = jax.random.split(key, 3)

    # Small case consistent with the module: single-tile path.
    batch, in_shape, out_shape = 8, 16, 8
    x = jax.random.normal(kx, (batch, in_shape), jnp.float32)
    params = init_params(kp, in_shape, out_shape)

    out = jax.block_until_ready(extrapolation_network(x, params))
    assert out.shape == (batch, out_shape)
    assert jnp.allclose(out, reference(x, params), atol=5e-3, rtol=5e-3), \
        "single-tile mismatch vs f32 reference"

    # Exercise the multi-grid-step + ragged-last-block path with a small forced tile.
    batch2 = 200
    x2 = jax.random.normal(kx2, (batch2, in_shape), jnp.float32)
    out2 = jax.block_until_ready(extrapolation_network(x2, params, tb=64))
    assert out2.shape == (batch2, out_shape)
    assert jnp.allclose(out2, reference(x2, params), atol=5e-3, rtol=5e-3), \
        "tiled/ragged-path mismatch vs f32 reference"

    print("KERNEL_OK")
</pallas_src>

<mosaic_0001>
module attributes {stable_mosaic.version = 11 : i64} {
  func.func @_mlp_kernel(%arg0: i32, %arg1: memref<8x16xf32, #tpu.memory_space<vmem>>, %arg2: memref<16x64xf32, #tpu.memory_space<vmem>>, %arg3: memref<1x64xf32, #tpu.memory_space<vmem>>, %arg4: memref<64x32xf32, #tpu.memory_space<vmem>>, %arg5: memref<1x32xf32, #tpu.memory_space<vmem>>, %arg6: memref<32x8xf32, #tpu.memory_space<vmem>>, %arg7: memref<1x8xf32, #tpu.memory_space<vmem>>, %arg8: memref<8x8xf32, #tpu.memory_space<vmem>>) attributes {dimension_semantics = [#tpu.dimension_semantics<parallel>], iteration_bounds = array<i64: 1>, scalar_prefetch = 0 : i64, scratch_operands = 0 : i64, tpu.core_type = #tpu.core_type<tc>, window_params = [{transform_indices = @transform_0, window_bounds = array<i64: 8, 16>}, {pipeline_mode = #tpu.pipeline_mode<synchronous>, transform_indices = @transform_1, window_bounds = array<i64: 16, 64>}, {pipeline_mode = #tpu.pipeline_mode<synchronous>, transform_indices = @transform_2, window_bounds = array<i64: 1, 64>}, {pipeline_mode = #tpu.pipeline_mode<synchronous>, transform_indices = @transform_3, window_bounds = array<i64: 64, 32>}, {pipeline_mode = #tpu.pipeline_mode<synchronous>, transform_indices = @transform_4, window_bounds = array<i64: 1, 32>}, {pipeline_mode = #tpu.pipeline_mode<synchronous>, transform_indices = @transform_5, window_bounds = array<i64: 32, 8>}, {pipeline_mode = #tpu.pipeline_mode<synchronous>, transform_indices = @transform_6, window_bounds = array<i64: 1, 8>}, {transform_indices = @transform_7, window_bounds = array<i64: 8, 8>}]} {
    %c0 = arith.constant 0 : index
    %c0_0 = arith.constant 0 : index
    %0 = vector.load %arg1[%c0, %c0_0] : memref<8x16xf32, #tpu.memory_space<vmem>>, vector<8x16xf32>
    %c0_1 = arith.constant 0 : index
    %c0_2 = arith.constant 0 : index
    %1 = vector.load %arg2[%c0_1, %c0_2] : memref<16x64xf32, #tpu.memory_space<vmem>>, vector<16x64xf32>
    %cst = arith.constant dense<0.000000e+00> : vector<8x64xf32>
    %2 = tpu.matmul %0, %1, %cst {dimension_numbers = #tpu.dot_dimension_numbers<[1], [0], [0], [1], [0, 0, 1, 1], [], []>} : vector<8x16xf32>, vector<16x64xf32>, vector<8x64xf32> -> vector<8x64xf32>
    %c0_3 = arith.constant 0 : index
    %c0_4 = arith.constant 0 : index
    %3 = vector.load %arg3[%c0_3, %c0_4] : memref<1x64xf32, #tpu.memory_space<vmem>>, vector<1x64xf32>
    %4 = vector.broadcast %3 : vector<1x64xf32> to vector<8x64xf32>
    %5 = arith.addf %2, %4 : vector<8x64xf32>
    %cst_5 = arith.constant 2.000000e-01 : f32
    %6 = vector.broadcast %cst_5 : f32 to vector<8x64xf32>
    %7 = arith.mulf %6, %5 : vector<8x64xf32>
    %8 = arith.maximumf %5, %7 : vector<8x64xf32>
    %c0_6 = arith.constant 0 : index
    %c0_7 = arith.constant 0 : index
    %9 = vector.load %arg4[%c0_6, %c0_7] : memref<64x32xf32, #tpu.memory_space<vmem>>, vector<64x32xf32>
    %cst_8 = arith.constant dense<0.000000e+00> : vector<8x32xf32>
    %10 = tpu.matmul %8, %9, %cst_8 {dimension_numbers = #tpu.dot_dimension_numbers<[1], [0], [0], [1], [0, 0, 1, 1], [], []>} : vector<8x64xf32>, vector<64x32xf32>, vector<8x32xf32> -> vector<8x32xf32>
    %c0_9 = arith.constant 0 : index
    %c0_10 = arith.constant 0 : index
    %11 = vector.load %arg5[%c0_9, %c0_10] : memref<1x32xf32, #tpu.memory_space<vmem>>, vector<1x32xf32>
    %12 = vector.broadcast %11 : vector<1x32xf32> to vector<8x32xf32>
    %13 = arith.addf %10, %12 : vector<8x32xf32>
    %cst_11 = arith.constant 2.000000e-01 : f32
    %14 = vector.broadcast %cst_11 : f32 to vector<8x32xf32>
    %15 = arith.mulf %14, %13 : vector<8x32xf32>
    %16 = arith.maximumf %13, %15 : vector<8x32xf32>
    %c0_12 = arith.constant 0 : index
    %c0_13 = arith.constant 0 : index
    %17 = vector.load %arg6[%c0_12, %c0_13] : memref<32x8xf32, #tpu.memory_space<vmem>>, vector<32x8xf32>
    %cst_14 = arith.constant dense<0.000000e+00> : vector<8x8xf32>
    %18 = tpu.matmul %16, %17, %cst_14 {dimension_numbers = #tpu.dot_dimension_numbers<[1], [0], [0], [1], [0, 0, 1, 1], [], []>} : vector<8x32xf32>, vector<32x8xf32>, vector<8x8xf32> -> vector<8x8xf32>
    %c0_15 = arith.constant 0 : index
    %c0_16 = arith.constant 0 : index
    %19 = vector.load %arg7[%c0_15, %c0_16] : memref<1x8xf32, #tpu.memory_space<vmem>>, vector<1x8xf32>
    %20 = vector.broadcast %19 : vector<1x8xf32> to vector<8x8xf32>
    %21 = arith.addf %18, %20 : vector<8x8xf32>
    %c0_17 = arith.constant 0 : index
    %c0_18 = arith.constant 0 : index
    %22 = vector.load %arg8[%c0_17, %c0_18] : memref<8x8xf32, #tpu.memory_space<vmem>>, vector<8x8xf32>
    tpu.vector_store %arg8[%c0_17, %c0_18], %21 {strides = array<i32>} : memref<8x8xf32, #tpu.memory_space<vmem>>, vector<8x8xf32>,
    return
  }
  func.func @transform_0(%arg0: i32) -> (i32, i32) {
    %c0_i32 = arith.constant 0 : i32
    %c0_i32_0 = arith.constant 0 : i32
    return %arg0, %c0_i32 : i32, i32
  }
  func.func @transform_1(%arg0: i32) -> (i32, i32) {
    %c0_i32 = arith.constant 0 : i32
    %c0_i32_0 = arith.constant 0 : i32
    %c0_i32_1 = arith.constant 0 : i32
    return %c0_i32, %c0_i32_0 : i32, i32
  }
  func.func @transform_2(%arg0: i32) -> (i32, i32) {
    %c0_i32 = arith.constant 0 : i32
    %c0_i32_0 = arith.constant 0 : i32
    %c0_i32_1 = arith.constant 0 : i32
    return %c0_i32, %c0_i32_0 : i32, i32
  }
  func.func @transform_3(%arg0: i32) -> (i32, i32) {
    %c0_i32 = arith.constant 0 : i32
    %c0_i32_0 = arith.constant 0 : i32
    %c0_i32_1 = arith.constant 0 : i32
    return %c0_i32, %c0_i32_0 : i32, i32
  }
  func.func @transform_4(%arg0: i32) -> (i32, i32) {
    %c0_i32 = arith.constant 0 : i32
    %c0_i32_0 = arith.constant 0 : i32
    %c0_i32_1 = arith.constant 0 : i32
    return %c0_i32, %c0_i32_0 : i32, i32
  }
  func.func @transform_5(%arg0: i32) -> (i32, i32) {
    %c0_i32 = arith.constant 0 : i32
    %c0_i32_0 = arith.constant 0 : i32
    %c0_i32_1 = arith.constant 0 : i32
    return %c0_i32, %c0_i32_0 : i32, i32
  }
  func.func @transform_6(%arg0: i32) -> (i32, i32) {
    %c0_i32 = arith.constant 0 : i32
    %c0_i32_0 = arith.constant 0 : i32
    %c0_i32_1 = arith.constant 0 : i32
    return %c0_i32, %c0_i32_0 : i32, i32
  }
  func.func @transform_7(%arg0: i32) -> (i32, i32) {
    %c0_i32 = arith.constant 0 : i32
    %c0_i32_0 = arith.constant 0 : i32
    return %arg0, %c0_i32 : i32, i32
  }
}

</mosaic_0001>

<llo_original>
// kernel: extrapolation_network.1
$region0: #{extrapolation_network.1}
  #allocation0 [shape = 'u32[]', space=smem, size = 0x4, offset = 0x4, fixed_abs, tag = 'smem constant byte address 0x4 - core index']
  #allocation1 [shape = 'u32[144,128]{1,0:T(1,128)}', space=vmem, size = 0x12000, scoped, tag = 'internal scratch']
  %s0 = inlined_call_operand.vmem [shape: f32[8,16], index: 0, kind: input, shape index: {}]
  %s1 = inlined_call_operand.vmem [shape: f32[16,64], index: 1, kind: input, shape index: {}]
  %s2 = inlined_call_operand.vmem [shape: f32[1,64], index: 2, kind: input, shape index: {}]
  %s3 = inlined_call_operand.vmem [shape: f32[64,32], index: 3, kind: input, shape index: {}]
  %s4 = inlined_call_operand.vmem [shape: f32[1,32], index: 4, kind: input, shape index: {}]
  %s5 = inlined_call_operand.vmem [shape: f32[32,8], index: 5, kind: input, shape index: {}]
  %s6 = inlined_call_operand.vmem [shape: f32[1,8], index: 6, kind: input, shape index: {}]
  %s7 = inlined_call_operand.hbm [shape: f32[8,8], index: 7, kind: output, shape index: {}]
  %s8 = sld [smem:[#allocation0]]
  $region38: #{extrapolation_network.1} parent=0
    _
  %s10 = ssub.s32 1, %s8
  %s11 = scalar_select 0, %s10, %s8
  $region1: #{extrapolation_network.1} parent=0
    #allocation2 [shape = 'u8[4096]{0}', space=vmem, size = 0x1000, scoped, tag = 'output window, operand 0, single buffered']
    #allocation3 [shape = 's32[1]{0}', space=sflag, size = 0x4, scoped, tag = 'scoped memory for extrapolation_network.1']
    %12 = vsyncpa [#allocation3], 0
    // Predicated region
    $region2: #{extrapolation_network.1} parent=1 // pred_check
      _
    $region3: #{extrapolation_network.1} parent=1 // pred_check_branch
      %14 = sbr.rel (0) target = $region5
    $region4: #{extrapolation_network.1} parent=1 // pred_region
      _
    $region5: #{extrapolation_network.1} parent=1 // pred_fallthru
      _
    // Predicated region
    $region6: #{extrapolation_network.1} parent=1 // pred_check
      _
    $region7: #{extrapolation_network.1} parent=1 // pred_check_branch
      %16 = sbr.rel (0) target = $region9
    $region8: #{extrapolation_network.1} parent=1 // pred_region
      _
    $region9: #{extrapolation_network.1} parent=1 // pred_fallthru
      _
    // Predicated region
    $region10: #{extrapolation_network.1} parent=1 // pred_check
      _
    $region11: #{extrapolation_network.1} parent=1 // pred_check_branch
      %18 = sbr.rel (0) target = $region13
    $region12: #{extrapolation_network.1} parent=1 // pred_region
      _
    $region13: #{extrapolation_network.1} parent=1 // pred_fallthru
      _
    // Predicated region
    $region14: #{extrapolation_network.1} parent=1 // pred_check
      _
    $region15: #{extrapolation_network.1} parent=1 // pred_check_branch
      %20 = sbr.rel (0) target = $region17
    $region16: #{extrapolation_network.1} parent=1 // pred_region
      _
    $region17: #{extrapolation_network.1} parent=1 // pred_fallthru
      _
    // Predicated region
    $region18: #{extrapolation_network.1} parent=1 // pred_check
      _
    $region19: #{extrapolation_network.1} parent=1 // pred_check_branch
      %22 = sbr.rel (0) target = $region21
    $region20: #{extrapolation_network.1} parent=1 // pred_region
      _
    $region21: #{extrapolation_network.1} parent=1 // pred_fallthru
      _
    // Predicated region
    $region22: #{extrapolation_network.1} parent=1 // pred_check
      _
    $region23: #{extrapolation_network.1} parent=1 // pred_check_branch
      %24 = sbr.rel (0) target = $region25
    $region24: #{extrapolation_network.1} parent=1 // pred_region
      _
    $region25: #{extrapolation_network.1} parent=1 // pred_fallthru
      _
    // Predicated region
    $region26: #{extrapolation_network.1} parent=1 // pred_check
      _
    $region27: #{extrapolation_network.1} parent=1 // pred_check_branch
      %26 = sbr.rel (0) target = $region29
    $region28: #{extrapolation_network.1} parent=1 // pred_region
      _
    $region29: #{extrapolation_network.1} parent=1 // pred_fallthru
      _
    %v27 = vld [vmem:[%s0] sm:$0xff]
    %v28 = vld [vmem:[%s1] sm:$0xff]
    %v29 = vld [vmem:[%s1 + $0x8] sm:$0xff]
    %v30 = vld [vmem:[%s2] sm:$0x1]
    %v32 = vlaneseq
    %v33 = vshrl.u32 %v32, 7
    %v34 = vsub.s32 0, %v33
    %v35 = vrot.slane %v30, %v34
    %vm37 = vcmask 130048
    %v39 = vsel %vm37, %v27, 0
    %41 = vmatprep.subr.mxu0 0.0
    %42 = vmatpush1.msra.mxu0 %v28
    %43 = vmatprep.subr.mxu0 0.0
    %44 = vmatpush1.msra.mxu0 %v29
    %45 = vmatprep.subr.mxu0 0.0
    %46 = vmatpush1.msra.mxu0 0.0
    %47 = vmatprep.subr.mxu0 0.0
    %48 = vmatpush1.msra.mxu0 0.0
    %49 = vmatprep.subr.mxu0 0.0
    %50 = vmatpush1.msra.mxu0 0.0
    %51 = vmatprep.subr.mxu0 0.0
    %52 = vmatpush1.msra.mxu0 0.0
    %53 = vmatprep.subr.mxu0 0.0
    %54 = vmatpush1.msra.mxu0 0.0
    %55 = vmatprep.subr.mxu0 0.0
    %56 = vmatpush1.msra.mxu0 0.0
    %57 = vmatprep.subr.mxu0 0.0
    %58 = vmatpush1.msra.mxu0 0.0
    %59 = vmatprep.subr.mxu0 0.0
    %60 = vmatpush1.msra.mxu0 0.0
    %61 = vmatprep.subr.mxu0 0.0
    %62 = vmatpush1.msra.mxu0 0.0
    %63 = vmatprep.subr.mxu0 0.0
    %64 = vmatpush1.msra.mxu0 0.0
    %65 = vmatprep.subr.mxu0 0.0
    %66 = vmatpush1.msra.mxu0 0.0
    %67 = vmatprep.subr.mxu0 0.0
    %68 = vmatpush1.msra.mxu0 0.0
    %69 = vmatprep.subr.mxu0 0.0
    %70 = vmatpush1.msra.mxu0 0.0
    %71 = vmatprep.subr.mxu0 0.0
    %72 = vmatpush1.msra.mxu0 0.0
    %73 = vmatprep.subr.mxu0 0.0
    %74 = vmatpush1.msra.mxu0 0.0
    %75 = vmatprep.subr.mxu0 0.0
    %76 = vmatpush1.msra.mxu0 0.0
    %77 = vmatprep.subr.mxu0 0.0
    %78 = vmatpush1.msra.mxu0 0.0
    %79 = vmatprep.subr.mxu0 0.0
    %80 = vmatpush1.msra.mxu0 0.0
    %81 = vmatprep.subr.mxu0 0.0
    %82 = vmatpush1.msra.mxu0 0.0
    %83 = vmatprep.subr.mxu0 0.0
    %84 = vmatpush1.msra.mxu0 0.0
    %85 = vmatprep.subr.mxu0 0.0
    %86 = vmatpush1.msra.mxu0 0.0
    %87 = vmatprep.subr.mxu0 0.0
    %88 = vmatpush1.msra.mxu0 0.0
    %89 = vmatprep.subr.mxu0 0.0
    %90 = vmatpush1.msra.mxu0 0.0
    %91 = vmatprep.subr.mxu0 0.0
    %92 = vmatpush1.msra.mxu0 0.0
    %93 = vmatprep.subr.mxu0 0.0
    %94 = vmatpush1.msra.mxu0 0.0
    %95 = vmatprep.subr.mxu0 0.0
    %96 = vmatpush1.msra.mxu0 0.0
    %97 = vmatprep.subr.mxu0 0.0
    %98 = vmatpush1.msra.mxu0 0.0
    %99 = vmatprep.subr.mxu0 0.0
    %100 = vmatpush1.msra.mxu0 0.0
    %101 = vmatprep.subr.mxu0 0.0
    %102 = vmatpush1.msra.mxu0 0.0
    %103 = vmatprep.subr.mxu0 0.0
    %104 = vmatpush1.msra.mxu0 0.0
    %105 = vmatprep.mubr.f32.mxu0 0.0
    %106 = vmatmul.mubr.f32.gmra.mrb[0].mxu0 %v39
    %v107 = vpop.f32.mrb[0].mxu0
    %v108 = vadd.f32 %v35, %v107
    %v109 = vpop.f32.mrb[0].mxu0
    %110 = vdwg.mxu0
    %v111 = vmul.f32 %v108, 0.2
    %v112 = vmax.f32 %v108, %v111
    %v113 = vld [vmem:[%s3] sm:$0xff]
    %v114 = vld [vmem:[%s3 + $0x8] sm:$0xff]
    %v115 = vld [vmem:[%s3 + $0x10] sm:$0xff]
    %v116 = vld [vmem:[%s3 + $0x18] sm:$0xff]
    %v117 = vld [vmem:[%s3 + $0x20] sm:$0xff]
    %v118 = vld [vmem:[%s3 + $0x28] sm:$0xff]
    %v119 = vld [vmem:[%s3 + $0x30] sm:$0xff]
    %v120 = vld [vmem:[%s3 + $0x38] sm:$0xff]
    %v121 = vld [vmem:[%s4] sm:$0x1]
    %v123 = vlaneseq
    %v124 = vshrl.u32 %v123, 7
    %v125 = vsub.s32 0, %v124
    %v126 = vrot.slane %v121, %v125
    %vm128 = vcmask 523264
    %v130 = vsel %vm128, %v112, 0
    %132 = vmatprep.subr.mxu0 0.0
    %133 = vmatpush1.msra.mxu0 %v113
    %134 = vmatprep.subr.mxu0 0.0
    %135 = vmatpush1.msra.mxu0 %v114
    %136 = vmatprep.subr.mxu0 0.0
    %137 = vmatpush1.msra.mxu0 %v115
    %138 = vmatprep.subr.mxu0 0.0
    %139 = vmatpush1.msra.mxu0 %v116
    %140 = vmatprep.subr.mxu0 0.0
    %141 = vmatpush1.msra.mxu0 %v117
    %142 = vmatprep.subr.mxu0 0.0
    %143 = vmatpush1.msra.mxu0 %v118
    %144 = vmatprep.subr.mxu0 0.0
    %145 = vmatpush1.msra.mxu0 %v119
    %146 = vmatprep.subr.mxu0 0.0
    %147 = vmatpush1.msra.mxu0 %v120
    %148 = vmatprep.subr.mxu0 0.0
    %149 = vmatpush1.msra.mxu0 0.0
    %150 = vmatprep.subr.mxu0 0.0
    %151 = vmatpush1.msra.mxu0 0.0
    %152 = vmatprep.subr.mxu0 0.0
    %153 = vmatpush1.msra.mxu0 0.0
    %154 = vmatprep.subr.mxu0 0.0
    %155 = vmatpush1.msra.mxu0 0.0
    %156 = vmatprep.subr.mxu0 0.0
    %157 = vmatpush1.msra.mxu0 0.0
    %158 = vmatprep.subr.mxu0 0.0
    %159 = vmatpush1.msra.mxu0 0.0
    %160 = vmatprep.subr.mxu0 0.0
    %161 = vmatpush1.msra.mxu0 0.0
    %162 = vmatprep.subr.mxu0 0.0
    %163 = vmatpush1.msra.mxu0 0.0
    %164 = vmatprep.subr.mxu0 0.0
    %165 = vmatpush1.msra.mxu0 0.0
    %166 = vmatprep.subr.mxu0 0.0
    %167 = vmatpush1.msra.mxu0 0.0
    %168 = vmatprep.subr.mxu0 0.0
    %169 = vmatpush1.msra.mxu0 0.0
    %170 = vmatprep.subr.mxu0 0.0
    %171 = vmatpush1.msra.mxu0 0.0
    %172 = vmatprep.subr.mxu0 0.0
    %173 = vmatpush1.msra.mxu0 0.0
    %174 = vmatprep.subr.mxu0 0.0
    %175 = vmatpush1.msra.mxu0 0.0
    %176 = vmatprep.subr.mxu0 0.0
    %177 = vmatpush1.msra.mxu0 0.0
    %178 = vmatprep.subr.mxu0 0.0
    %179 = vmatpush1.msra.mxu0 0.0
    %180 = vmatprep.subr.mxu0 0.0
    %181 = vmatpush1.msra.mxu0 0.0
    %182 = vmatprep.subr.mxu0 0.0
    %183 = vmatpush1.msra.mxu0 0.0
    %184 = vmatprep.subr.mxu0 0.0
    %185 = vmatpush1.msra.mxu0 0.0
    %186 = vmatprep.subr.mxu0 0.0
    %187 = vmatpush1.msra.mxu0 0.0
    %188 = vmatprep.subr.mxu0 0.0
    %189 = vmatpush1.msra.mxu0 0.0
    %190 = vmatprep.subr.mxu0 0.0
    %191 = vmatpush1.msra.mxu0 0.0
    %192 = vmatprep.subr.mxu0 0.0
    %193 = vmatpush1.msra.mxu0 0.0
    %194 = vmatprep.subr.mxu0 0.0
    %195 = vmatpush1.msra.mxu0 0.0
    %196 = vmatprep.mubr.f32.mxu0 0.0
    %197 = vmatmul.mubr.f32.gmra.mrb[0].mxu0 %v130
    %v198 = vpop.f32.mrb[0].mxu0
    %v199 = vadd.f32 %v126, %v198
    %v200 = vpop.f32.mrb[0].mxu0
    %201 = vdwg.mxu0
    %v202 = vmul.f32 %v199, 0.2
    %v203 = vmax.f32 %v199, %v202
    %v204 = vld [vmem:[%s5] sm:$0xff]
    %v205 = vld [vmem:[%s5 + $0x8] sm:$0xff]
    %v206 = vld [vmem:[%s5 + $0x10] sm:$0xff]
    %v207 = vld [vmem:[%s5 + $0x18] sm:$0xff]
    %v208 = vld [vmem:[%s6] sm:$0x1]
    %v210 = vlaneseq
    %v211 = vshrl.u32 %v210, 7
    %v212 = vsub.s32 0, %v211
    %v213 = vrot.slane %v208, %v212
    %vm215 = vcmask 261120
    %v217 = vsel %vm215, %v203, 0
    %219 = vmatprep.subr.mxu0 0.0
    %220 = vmatpush1.msra.mxu0 %v204
    %221 = vmatprep.subr.mxu0 0.0
    %222 = vmatpush1.msra.mxu0 %v205
    %223 = vmatprep.subr.mxu0 0.0
    %224 = vmatpush1.msra.mxu0 %v206
    %225 = vmatprep.subr.mxu0 0.0
    %226 = vmatpush1.msra.mxu0 %v207
    %227 = vmatprep.subr.mxu0 0.0
    %228 = vmatpush1.msra.mxu0 0.0
    %229 = vmatprep.subr.mxu0 0.0
    %230 = vmatpush1.msra.mxu0 0.0
    %231 = vmatprep.subr.mxu0 0.0
    %232 = vmatpush1.msra.mxu0 0.0
    %233 = vmatprep.subr.mxu0 0.0
    %234 = vmatpush1.msra.mxu0 0.0
    %235 = vmatprep.subr.mxu0 0.0
    %236 = vmatpush1.msra.mxu0 0.0
    %237 = vmatprep.subr.mxu0 0.0
    %238 = vmatpush1.msra.mxu0 0.0
    %239 = vmatprep.subr.mxu0 0.0
    %240 = vmatpush1.msra.mxu0 0.0
    %241 = vmatprep.subr.mxu0 0.0
    %242 = vmatpush1.msra.mxu0 0.0
    %243 = vmatprep.subr.mxu0 0.0
    %244 = vmatpush1.msra.mxu0 0.0
    %245 = vmatprep.subr.mxu0 0.0
    %246 = vmatpush1.msra.mxu0 0.0
    %247 = vmatprep.subr.mxu0 0.0
    %248 = vmatpush1.msra.mxu0 0.0
    %249 = vmatprep.subr.mxu0 0.0
    %250 = vmatpush1.msra.mxu0 0.0
    %251 = vmatprep.subr.mxu0 0.0
    %252 = vmatpush1.msra.mxu0 0.0
    %253 = vmatprep.subr.mxu0 0.0
    %254 = vmatpush1.msra.mxu0 0.0
    %255 = vmatprep.subr.mxu0 0.0
    %256 = vmatpush1.msra.mxu0 0.0
    %257 = vmatprep.subr.mxu0 0.0
    %258 = vmatpush1.msra.mxu0 0.0
    %259 = vmatprep.subr.mxu0 0.0
    %260 = vmatpush1.msra.mxu0 0.0
    %261 = vmatprep.subr.mxu0 0.0
    %262 = vmatpush1.msra.mxu0 0.0
    %263 = vmatprep.subr.mxu0 0.0
    %264 = vmatpush1.msra.mxu0 0.0
    %265 = vmatprep.subr.mxu0 0.0
    %266 = vmatpush1.msra.mxu0 0.0
    %267 = vmatprep.subr.mxu0 0.0
    %268 = vmatpush1.msra.mxu0 0.0
    %269 = vmatprep.subr.mxu0 0.0
    %270 = vmatpush1.msra.mxu0 0.0
    %271 = vmatprep.subr.mxu0 0.0
    %272 = vmatpush1.msra.mxu0 0.0
    %273 = vmatprep.subr.mxu0 0.0
    %274 = vmatpush1.msra.mxu0 0.0
    %275 = vmatprep.subr.mxu0 0.0
    %276 = vmatpush1.msra.mxu0 0.0
    %277 = vmatprep.subr.mxu0 0.0
    %278 = vmatpush1.msra.mxu0 0.0
    %279 = vmatprep.subr.mxu0 0.0
    %280 = vmatpush1.msra.mxu0 0.0
    %281 = vmatprep.subr.mxu0 0.0
    %282 = vmatpush1.msra.mxu0 0.0
    %283 = vmatprep.mubr.f32.mxu0 0.0
    %284 = vmatmul.mubr.f32.gmra.mrb[0].mxu0 %v217
    %v285 = vpop.f32.mrb[0].mxu0
    %v286 = vadd.f32 %v213, %v285
    %v287 = vpop.f32.mrb[0].mxu0
    %288 = vdwg.mxu0
    %vm289 = vcmask 64512
    %290 = vst.msk [vmem:[#allocation2] sm:$0xff] %vm289, %v286
    // Predicated region
    $region30: #{extrapolation_network.1} parent=1 // pred_check
      _
    $region31: #{extrapolation_network.1} parent=1 // pred_check_branch
      %292 = sbr.rel (0) target = $region33
    $region32: #{extrapolation_network.1} parent=1 // pred_region
      %s294 = ssub.s32 128, 128
      %295 = vsyncadd [#allocation3], %s294
      %s297 = sshll.u32 [#allocation2], 4
      %s298 = int_to_ptr.vmem [resolvable:$true] %s297
      %300 = dma.vmem_to_hbm [thread:$0]  %s298, 128, %s7, [#allocation3]
    $region33: #{extrapolation_network.1} parent=1 // pred_fallthru
      _
    // Predicated region
    $region34: #{extrapolation_network.1} parent=1 // pred_check
      _
    $region35: #{extrapolation_network.1} parent=1 // pred_check_branch
      %302 = sbr.rel (0) target = $region37
    $region36: #{extrapolation_network.1} parent=1 // pred_region
      %303 = dma.done [#allocation3], 128
    $region37: #{extrapolation_network.1} parent=1 // pred_fallthru
      _
    %304 = vsyncpa [#allocation3], 1

</llo_original>
